<compile_context>
chip_gen: v7x
topology: tpu7x:2x2x1
jax: 0.10.0
libtpu: 0.0.40
codegen_flags: <defaults>
</compile_context>

<pallas_src>
import jax
import jax.numpy as jnp
from jax.experimental import pallas as pl
from jax.experimental.pallas import tpu as pltpu


def _round_up(x, m):
    return (x + m - 1) // m * m


# ----------------------------- Pallas kernel ------------------------------- #
def _rnn_chunk_kernel(x_ref, wxh_ref, whh_ref, b_ref, h0_ref, o_ref, h_ref):
    """One time-chunk of the tanh-RNN recurrence.

    x_ref:   (T_chunk*B_pad, D)      chunk of the sequence-major input
    wxh_ref: (D, H_pad)              Wxh^T (lane-padded)
    whh_ref: (H_pad, H_pad)          Whh^T
    b_ref:   (1, H_pad)              Whh bias
    h0_ref:  (B_pad, H_pad)          initial hidden state
    o_ref:   (T_chunk*B_pad, H_pad)  chunk of hidden-state outputs (f32)
    h_ref:   (B_pad, H_pad) f32      carried hidden state (persists across grid steps)
    """
    n_b = h_ref.shape[0]
    t_chunk = o_ref.shape[0] // n_b

    # First chunk: seed the carried hidden state from h0.
    @pl.when(pl.program_id(0) == 0)
    def _():
        h_ref[...] = h0_ref[...].astype(jnp.float32)

    # Hoisted input projection for the whole chunk (one dense MXU matmul),
    # bias folded in, written straight into the f32 output block (no separate
    # projection scratch).
    o_ref[...] = (
        jnp.dot(x_ref[...], wxh_ref[...], preferred_element_type=jnp.float32)
        + b_ref[...]
    )

    whh_t = whh_ref[...]          # H_pad x H_pad, resident for the whole chunk

    # Serial recurrence: only h @ Whh^T + tanh remains on the critical path.
    # Every per-step slice is sublane-aligned (B_pad % 8 == 0) and lane-dense
    # (H_pad % 128 == 0) -> whole-vreg vld/vst, no masked partial stores.
    # NOTE: default MXU precision; for very long sequences / large H consider
    # precision=jax.lax.Precision.HIGHEST on this dot (error compounds over T).
    def step(t, h):
        base = pl.multiple_of(t * n_b, n_b)
        pre = o_ref[pl.ds(base, n_b), :] + jnp.dot(
            h, whh_t, preferred_element_type=jnp.float32)
        h_new = jnp.tanh(pre)
        o_ref[pl.ds(base, n_b), :] = h_new
        return h_new

    # Modest unroll: straight-line code for the LLO scheduler without blowing
    # the vreg file for large H.
    h_ref[...] = jax.lax.fori_loop(0, t_chunk, step, h_ref[...],
                                   unroll=min(t_chunk, 8))


# ------------------------------ Python wrapper ------------------------------ #
def _choose_t_chunk(T, B_pad, D, H_pad, block_budget_bytes=12 << 20):
    """Largest time-chunk whose double-buffered blocks fit the VMEM budget."""
    fixed = 4 * 2 * (D * H_pad + H_pad * H_pad + H_pad + B_pad * H_pad) \
            + 4 * B_pad * H_pad                         # weights/bias/h0 + carry
    per_t = 4 * 2 * B_pad * (D + H_pad)                 # x + out blocks, 2 bufs
    avail = max(block_budget_bytes - fixed, per_t)
    return int(max(1, min(T, avail // per_t)))


def custom_rnn_forward(x, wxh, whh, bhh, h0=None, *, t_chunk=None):
    """CustomRNN.forward (noise_stddev == 0).

    x:   (B, T, D) float32
    wxh: (H, D)   nn.Linear weight layout (out_features, in_features), no bias
    whh: (H, H)   nn.Linear weight layout
    bhh: (H,)     Whh bias
    h0:  optional (B, H); zeros if None (reset_hiddens=True path)
    returns hiddens: (B, T, H)
    """
    # TODO(synk): noise_stddev > 0 path (torch.randn_like noise) not implemented;
    # pltpu.prng_seed/prng_random_bits inside step() would cover it in-kernel.
    B, T, D = x.shape
    H = whh.shape[0]
    if h0 is None:
        h0 = jnp.zeros((B, H), jnp.float32)

    B_pad = _round_up(B, 8)          # sublane-dense per-step (B, H) slabs
    H_pad = _round_up(H, 128)        # lane-dense vregs / unmasked stores
    if t_chunk is None:
        t_chunk = _choose_t_chunk(T, B_pad, D, H_pad)
    t_chunk = max(1, min(int(t_chunk), T))
    T_pad = _round_up(T, t_chunk)
    n_chunks = T_pad // t_chunk

    # One-shot staging (a single fused HBM pass over x): sequence-major, batch
    # padded to 8 sublanes, extra timesteps zero (discarded after the call).
    # TODO(synk): for B%8==0 / H%128==0 this staging (and the output transpose
    # below) could move into the BlockSpec index_maps to save HBM round trips.
    x_seq = jnp.transpose(x, (1, 0, 2))                               # (T, B, D)
    x_seq = jnp.pad(x_seq, ((0, T_pad - T), (0, B_pad - B), (0, 0)))
    x2 = x_seq.reshape(T_pad * B_pad, D).astype(jnp.float32)

    wxh_t = jnp.pad(jnp.transpose(wxh).astype(jnp.float32),
                    ((0, 0), (0, H_pad - H)))                         # (D, H_pad)
    whh_t = jnp.pad(jnp.transpose(whh).astype(jnp.float32),
                    ((0, H_pad - H), (0, H_pad - H)))                 # (H_pad, H_pad)
    b2 = jnp.pad(bhh.astype(jnp.float32), (0, H_pad - H)).reshape(1, H_pad)
    h0p = jnp.pad(h0.astype(jnp.float32), ((0, B_pad - B), (0, H_pad - H)))

    out2 = pl.pallas_call(
        _rnn_chunk_kernel,
        # f32 output is required for the "projection written in place into the
        # output block" trick (a narrower dtype would truncate pre-activations).
        out_shape=jax.ShapeDtypeStruct((T_pad * B_pad, H_pad), jnp.float32),
        grid_spec=pltpu.PrefetchScalarGridSpec(
            num_scalar_prefetch=0,
            grid=(n_chunks,),
            in_specs=[
                pl.BlockSpec((t_chunk * B_pad, D), lambda t: (t, 0)),   # x chunk
                pl.BlockSpec((D, H_pad), lambda t: (0, 0)),             # Wxh^T
                pl.BlockSpec((H_pad, H_pad), lambda t: (0, 0)),         # Whh^T
                pl.BlockSpec((1, H_pad), lambda t: (0, 0)),             # bias
                pl.BlockSpec((B_pad, H_pad), lambda t: (0, 0)),         # h0
            ],
            out_specs=pl.BlockSpec((t_chunk * B_pad, H_pad), lambda t: (t, 0)),
            scratch_shapes=[pltpu.VMEM((B_pad, H_pad), jnp.float32)],   # carried h
        ),
        compiler_params=pltpu.CompilerParams(
            dimension_semantics=("arbitrary",),        # chunks are sequential
            vmem_limit_bytes=48 * 1024 * 1024,         # explicit: fits v7x 64 MiB
        ),
    )(x2, wxh_t, whh_t, b2, h0p)

    out = out2.reshape(T_pad, B_pad, H_pad)[:T, :B, :H]
    return jnp.transpose(out, (1, 0, 2)).astype(x.dtype)               # (B, T, H)


# --------------------------- parameter building ---------------------------- #
def init_custom_rnn_params(key, input_size, hidden_size):
    """Deterministic init mirroring CustomRNN.__init__ (kaiming_normal, fan_out, tanh)."""
    k1, k2, k3 = jax.random.split(key, 3)
    gain = 5.0 / 3.0                                 # torch gain for tanh
    std = gain / jnp.sqrt(jnp.float32(hidden_size))  # fan_out = hidden_size
    wxh = jax.random.normal(k1, (hidden_size, input_size), jnp.float32) * std
    whh = jax.random.normal(k2, (hidden_size, hidden_size), jnp.float32) * std
    bound = 1.0 / jnp.sqrt(jnp.float32(hidden_size))
    bhh = jax.random.uniform(k3, (hidden_size,), jnp.float32, -bound, bound)
    return {"wxh": wxh, "whh": whh, "bhh": bhh}


# ---------------------------- pure-JAX reference ---------------------------- #
def _rnn_ref(x, wxh, whh, bhh, h0=None):
    B, T, _ = x.shape
    H = whh.shape[0]
    h = jnp.zeros((B, H), jnp.float32) if h0 is None else h0
    hs = []
    for t in range(T):
        h = jnp.tanh(x[:, t, :] @ wxh.T + h @ whh.T + bhh)
        hs.append(h)
    return jnp.stack(hs, axis=1)


# ----------------------------------- main ----------------------------------- #
if __name__ == "__main__":
    key = jax.random.PRNGKey(0)
    k_p, k_x = jax.random.split(key)

    B, T, D_IN, HIDDEN = 2, 8, 5, 32
    params = init_custom_rnn_params(k_p, D_IN, HIDDEN)
    x = jax.random.normal(k_x, (B, T, D_IN), jnp.float32)

    y_ref = _rnn_ref(x, params["wxh"], params["whh"], params["bhh"])

    # Multi-chunk path (grid=(2,)): exercises the carried-h scratch across
    # grid steps plus the double-buffered chunk pipeline.
    fwd = jax.jit(lambda inp, h0=None: custom_rnn_forward(
        inp, params["wxh"], params["whh"], params["bhh"], h0, t_chunk=4))
    y = fwd(x)
    jax.block_until_ready(y)
    assert y.shape == (B, T, HIDDEN), y.shape
    assert jnp.allclose(y, y_ref, atol=1e-5, rtol=1e-5)

    # Ragged chunking (t_chunk=3 does not divide T=8): exercises the padded
    # trailing chunk / T padding path.
    y3 = custom_rnn_forward(x, params["wxh"], params["whh"], params["bhh"],
                            t_chunk=3)
    jax.block_until_ready(y3)
    assert jnp.allclose(y3, y_ref, atol=1e-5, rtol=1e-5)

    # Explicit h0 path (mimics reset_hiddens=False chaining: self.h0 = last h).
    h_last = y[:, -1, :]
    y2 = fwd(x, h_last)
    jax.block_until_ready(y2)
    y2_ref = _rnn_ref(x, params["wxh"], params["whh"], params["bhh"], h_last)
    assert jnp.allclose(y2, y2_ref, atol=1e-5, rtol=1e-5)

    print("KERNEL_OK")
</pallas_src>

<mosaic_0001>
module attributes {stable_mosaic.version = 11 : i64} {
  func.func @_rnn_chunk_kernel(%arg0: i32, %arg1: memref<32x5xf32, #tpu.memory_space<vmem>>, %arg2: memref<5x128xf32, #tpu.memory_space<vmem>>, %arg3: memref<128x128xf32, #tpu.memory_space<vmem>>, %arg4: memref<1x128xf32, #tpu.memory_space<vmem>>, %arg5: memref<8x128xf32, #tpu.memory_space<vmem>>, %arg6: memref<32x128xf32, #tpu.memory_space<vmem>>, %arg7: memref<8x128xf32, #tpu.memory_space<vmem>>) attributes {dimension_semantics = [#tpu.dimension_semantics<arbitrary>], iteration_bounds = array<i64: 2>, scalar_prefetch = 0 : i64, scratch_operands = 1 : i64, tpu.core_type = #tpu.core_type<tc>, window_params = [{transform_indices = @transform_0, window_bounds = array<i64: 32, 5>}, {pipeline_mode = #tpu.pipeline_mode<synchronous>, transform_indices = @transform_1, window_bounds = array<i64: 5, 128>}, {pipeline_mode = #tpu.pipeline_mode<synchronous>, transform_indices = @transform_2, window_bounds = array<i64: 128, 128>}, {pipeline_mode = #tpu.pipeline_mode<synchronous>, transform_indices = @transform_3, window_bounds = array<i64: 1, 128>}, {pipeline_mode = #tpu.pipeline_mode<synchronous>, transform_indices = @transform_4, window_bounds = array<i64: 8, 128>}, {transform_indices = @transform_5, window_bounds = array<i64: 32, 128>}]} {
    %c0_i32 = arith.constant 0 : i32
    %0 = arith.cmpi eq, %arg0, %c0_i32 : i32
    %1 = arith.extui %0 : i1 to i32
    %c0_i32_0 = arith.constant 0 : i32
    %2 = arith.cmpi ne, %1, %c0_i32_0 : i32
    scf.if %2 {
      %c0_30 = arith.constant 0 : index
      %c0_31 = arith.constant 0 : index
      %49 = vector.load %arg5[%c0_30, %c0_31] : memref<8x128xf32, #tpu.memory_space<vmem>>, vector<8x128xf32>
      %c0_32 = arith.constant 0 : index
      %c0_33 = arith.constant 0 : index
      %50 = vector.load %arg7[%c0_32, %c0_33] : memref<8x128xf32, #tpu.memory_space<vmem>>, vector<8x128xf32>
      tpu.vector_store %arg7[%c0_32, %c0_33], %49 {strides = array<i32>} : memref<8x128xf32, #tpu.memory_space<vmem>>, vector<8x128xf32>,
    } else {
    }
    %c0 = arith.constant 0 : index
    %c0_1 = arith.constant 0 : index
    %3 = vector.load %arg1[%c0, %c0_1] : memref<32x5xf32, #tpu.memory_space<vmem>>, vector<32x5xf32>
    %c0_2 = arith.constant 0 : index
    %c0_3 = arith.constant 0 : index
    %4 = vector.load %arg2[%c0_2, %c0_3] : memref<5x128xf32, #tpu.memory_space<vmem>>, vector<5x128xf32>
    %cst = arith.constant dense<0.000000e+00> : vector<32x128xf32>
    %5 = tpu.matmul %3, %4, %cst {dimension_numbers = #tpu.dot_dimension_numbers<[1], [0], [0], [1], [0, 0, 1, 1], [], []>} : vector<32x5xf32>, vector<5x128xf32>, vector<32x128xf32> -> vector<32x128xf32>
    %c0_4 = arith.constant 0 : index
    %c0_5 = arith.constant 0 : index
    %6 = vector.load %arg4[%c0_4, %c0_5] : memref<1x128xf32, #tpu.memory_space<vmem>>, vector<1x128xf32>
    %7 = vector.broadcast %6 : vector<1x128xf32> to vector<32x128xf32>
    %8 = arith.addf %5, %7 : vector<32x128xf32>
    %c0_6 = arith.constant 0 : index
    %c0_7 = arith.constant 0 : index
    %9 = vector.load %arg6[%c0_6, %c0_7] : memref<32x128xf32, #tpu.memory_space<vmem>>, vector<32x128xf32>
    tpu.vector_store %arg6[%c0_6, %c0_7], %8 {strides = array<i32>} : memref<32x128xf32, #tpu.memory_space<vmem>>, vector<32x128xf32>,
    %c0_8 = arith.constant 0 : index
    %c0_9 = arith.constant 0 : index
    %10 = vector.load %arg3[%c0_8, %c0_9] : memref<128x128xf32, #tpu.memory_space<vmem>>, vector<128x128xf32>
    %c0_10 = arith.constant 0 : index
    %c0_11 = arith.constant 0 : index
    %11 = vector.load %arg7[%c0_10, %c0_11] : memref<8x128xf32, #tpu.memory_space<vmem>>, vector<8x128xf32>
    %c0_i32_12 = arith.constant 0 : i32
    %c8_i32 = arith.constant 8 : i32
    %12 = arith.muli %c0_i32_12, %c8_i32 : i32
    %13 = tpu.assume_multiple %12, 8 : i32
    %14 = arith.index_cast %13 : i32 to index
    %c0_13 = arith.constant 0 : index
    %15 = vector.load %arg6[%14, %c0_13] : memref<32x128xf32, #tpu.memory_space<vmem>>, vector<8x128xf32>
    %cst_14 = arith.constant dense<0.000000e+00> : vector<8x128xf32>
    %16 = tpu.matmul %11, %10, %cst_14 {dimension_numbers = #tpu.dot_dimension_numbers<[1], [0], [0], [1], [0, 0, 1, 1], [], []>} : vector<8x128xf32>, vector<128x128xf32>, vector<8x128xf32> -> vector<8x128xf32>
    %17 = arith.addf %15, %16 : vector<8x128xf32>
    %18 = math.tanh %17 : vector<8x128xf32>
    %19 = arith.index_cast %13 : i32 to index
    %c0_15 = arith.constant 0 : index
    %20 = vector.load %arg6[%19, %c0_15] : memref<32x128xf32, #tpu.memory_space<vmem>>, vector<8x128xf32>
    tpu.vector_store %arg6[%19, %c0_15], %18 {strides = array<i32>} : memref<32x128xf32, #tpu.memory_space<vmem>>, vector<8x128xf32>,
    %c1_i32 = arith.constant 1 : i32
    %c8_i32_16 = arith.constant 8 : i32
    %21 = arith.muli %c1_i32, %c8_i32_16 : i32
    %22 = tpu.assume_multiple %21, 8 : i32
    %23 = arith.index_cast %22 : i32 to index
    %c0_17 = arith.constant 0 : index
    %24 = vector.load %arg6[%23, %c0_17] : memref<32x128xf32, #tpu.memory_space<vmem>>, vector<8x128xf32>
    %cst_18 = arith.constant dense<0.000000e+00> : vector<8x128xf32>
    %25 = tpu.matmul %18, %10, %cst_18 {dimension_numbers = #tpu.dot_dimension_numbers<[1], [0], [0], [1], [0, 0, 1, 1], [], []>} : vector<8x128xf32>, vector<128x128xf32>, vector<8x128xf32> -> vector<8x128xf32>
    %26 = arith.addf %24, %25 : vector<8x128xf32>
    %27 = math.tanh %26 : vector<8x128xf32>
    %28 = arith.index_cast %22 : i32 to index
    %c0_19 = arith.constant 0 : index
    %29 = vector.load %arg6[%28, %c0_19] : memref<32x128xf32, #tpu.memory_space<vmem>>, vector<8x128xf32>
    tpu.vector_store %arg6[%28, %c0_19], %27 {strides = array<i32>} : memref<32x128xf32, #tpu.memory_space<vmem>>, vector<8x128xf32>,
    %c2_i32 = arith.constant 2 : i32
    %c8_i32_20 = arith.constant 8 : i32
    %30 = arith.muli %c2_i32, %c8_i32_20 : i32
    %31 = tpu.assume_multiple %30, 8 : i32
    %32 = arith.index_cast %31 : i32 to index
    %c0_21 = arith.constant 0 : index
    %33 = vector.load %arg6[%32, %c0_21] : memref<32x128xf32, #tpu.memory_space<vmem>>, vector<8x128xf32>
    %cst_22 = arith.constant dense<0.000000e+00> : vector<8x128xf32>
    %34 = tpu.matmul %27, %10, %cst_22 {dimension_numbers = #tpu.dot_dimension_numbers<[1], [0], [0], [1], [0, 0, 1, 1], [], []>} : vector<8x128xf32>, vector<128x128xf32>, vector<8x128xf32> -> vector<8x128xf32>
    %35 = arith.addf %33, %34 : vector<8x128xf32>
    %36 = math.tanh %35 : vector<8x128xf32>
    %37 = arith.index_cast %31 : i32 to index
    %c0_23 = arith.constant 0 : index
    %38 = vector.load %arg6[%37, %c0_23] : memref<32x128xf32, #tpu.memory_space<vmem>>, vector<8x128xf32>
    tpu.vector_store %arg6[%37, %c0_23], %36 {strides = array<i32>} : memref<32x128xf32, #tpu.memory_space<vmem>>, vector<8x128xf32>,
    %c3_i32 = arith.constant 3 : i32
    %c8_i32_24 = arith.constant 8 : i32
    %39 = arith.muli %c3_i32, %c8_i32_24 : i32
    %40 = tpu.assume_multiple %39, 8 : i32
    %41 = arith.index_cast %40 : i32 to index
    %c0_25 = arith.constant 0 : index
    %42 = vector.load %arg6[%41, %c0_25] : memref<32x128xf32, #tpu.memory_space<vmem>>, vector<8x128xf32>
    %cst_26 = arith.constant dense<0.000000e+00> : vector<8x128xf32>
    %43 = tpu.matmul %36, %10, %cst_26 {dimension_numbers = #tpu.dot_dimension_numbers<[1], [0], [0], [1], [0, 0, 1, 1], [], []>} : vector<8x128xf32>, vector<128x128xf32>, vector<8x128xf32> -> vector<8x128xf32>
    %44 = arith.addf %42, %43 : vector<8x128xf32>
    %45 = math.tanh %44 : vector<8x128xf32>
    %46 = arith.index_cast %40 : i32 to index
    %c0_27 = arith.constant 0 : index
    %47 = vector.load %arg6[%46, %c0_27] : memref<32x128xf32, #tpu.memory_space<vmem>>, vector<8x128xf32>
    tpu.vector_store %arg6[%46, %c0_27], %45 {strides = array<i32>} : memref<32x128xf32, #tpu.memory_space<vmem>>, vector<8x128xf32>,
    %c4_i32 = arith.constant 4 : i32
    %c0_28 = arith.constant 0 : index
    %c0_29 = arith.constant 0 : index
    %48 = vector.load %arg7[%c0_28, %c0_29] : memref<8x128xf32, #tpu.memory_space<vmem>>, vector<8x128xf32>
    tpu.vector_store %arg7[%c0_28, %c0_29], %45 {strides = array<i32>} : memref<8x128xf32, #tpu.memory_space<vmem>>, vector<8x128xf32>,
    return
  }
  func.func @transform_0(%arg0: i32) -> (i32, i32) {
    %c0_i32 = arith.constant 0 : i32
    %c0_i32_0 = arith.constant 0 : i32
    return %arg0, %c0_i32 : i32, i32
  }
  func.func @transform_1(%arg0: i32) -> (i32, i32) {
    %c0_i32 = arith.constant 0 : i32
    %c0_i32_0 = arith.constant 0 : i32
    %c0_i32_1 = arith.constant 0 : i32
    return %c0_i32, %c0_i32_0 : i32, i32
  }
  func.func @transform_2(%arg0: i32) -> (i32, i32) {
    %c0_i32 = arith.constant 0 : i32
    %c0_i32_0 = arith.constant 0 : i32
    %c0_i32_1 = arith.constant 0 : i32
    return %c0_i32, %c0_i32_0 : i32, i32
  }
  func.func @transform_3(%arg0: i32) -> (i32, i32) {
    %c0_i32 = arith.constant 0 : i32
    %c0_i32_0 = arith.constant 0 : i32
    %c0_i32_1 = arith.constant 0 : i32
    return %c0_i32, %c0_i32_0 : i32, i32
  }
  func.func @transform_4(%arg0: i32) -> (i32, i32) {
    %c0_i32 = arith.constant 0 : i32
    %c0_i32_0 = arith.constant 0 : i32
    %c0_i32_1 = arith.constant 0 : i32
    return %c0_i32, %c0_i32_0 : i32, i32
  }
  func.func @transform_5(%arg0: i32) -> (i32, i32) {
    %c0_i32 = arith.constant 0 : i32
    %c0_i32_0 = arith.constant 0 : i32
    return %arg0, %c0_i32 : i32, i32
  }
}

</mosaic_0001>

<llo_original>
// kernel: _lambda_.1
$region0: #{_lambda_.1}
  #allocation0 [shape = 'u32[]', space=smem, size = 0x4, offset = 0x4, fixed_abs, tag = 'smem constant byte address 0x4 - core index']
  #allocation1 [shape = 'u32[144,128]{1,0:T(1,128)}', space=vmem, size = 0x12000, scoped, tag = 'internal scratch']
  #allocation2 [shape = 'f32[8,128]{1,0:T(8,128)}', space=vmem, size = 0x1000, scoped, tag = 'scratch operand']
  %s0 = inlined_call_operand.vmem [shape: f32[64,5], index: 0, kind: input, shape index: {}]
  %s1 = inlined_call_operand.hbm [shape: f32[5,128], index: 1, kind: input, shape index: {}]
  %s2 = inlined_call_operand.vmem [shape: f32[128,128], index: 2, kind: input, shape index: {}]
  %s3 = inlined_call_operand.vmem [shape: f32[1,128], index: 3, kind: input, shape index: {}]
  %s4 = inlined_call_operand.vmem [shape: f32[8,128], index: 4, kind: input, shape index: {}]
  %s5 = inlined_call_operand.vmem [shape: f32[64,128], index: 5, kind: output, shape index: {}]
  %s6 = sld [smem:[#allocation0]]
  $region61: #{_lambda_.1} parent=0
    _
  %s8 = ssub.s32 1, %s6
  %s9 = scalar_select 0, %s8, %s6
  $region1: #{_lambda_.1} parent=0
    #allocation3 [shape = 'u8[4096]{0}', space=vmem, size = 0x1000, scoped, tag = 'input window, operand 1, single buffered']
    #allocation4 [shape = 's32[2]{0}', space=sflag, size = 0x8, scoped, tag = 'scoped memory for _lambda_.1']
    %10 = vsyncpa [#allocation4], 0
    loop: start=0, step=1, limit=4
    $region2: #{_lambda_.1} parent=1 // loop_pre_header
      _
    $region3: #{_lambda_.1} parent=1 // loop_header
      %s12 = sphi 0, %s16
      %p13 = scmp.ge.s32.totalorder %s12, 4
      %s22 = sphi 0, %s24
      %s25 = sphi 0, %s22
      %s26 = sphi 0, %s25
      %s42 = sphi 0, %s26
      %s46 = sphi 0, %s46
      %s48 = sphi 0, %s46
      %s49 = sphi 0, %s48
      %s63 = sphi 0, %s49
      %s67 = sphi 0, %s67
      %s69 = sphi 0, %s67
      %s70 = sphi 0, %s69
      %s84 = sphi 0, %s70
      %s88 = sphi 0, %s88
      %s90 = sphi 0, %s88
      %s91 = sphi 0, %s90
      %s105 = sphi 0, %s91
      %s109 = sphi 0, %s109
      %s111 = sphi 0, %s109
      %s112 = sphi 0, %s111
      %s126 = sphi 0, %s112
      %s132 = sphi 0, %s134
      %s135 = sphi 0, %s132
      %s136 = sphi 0, %s135
      %s152 = sphi 0, %s136
    $region4: #{_lambda_.1} parent=1 // loop_header_branch
      %15 = sbr.rel (%p13) target = $region8
    $region5: #{_lambda_.1} parent=1 // loop_body
      %s17 = ssub.s32 %s12, 1
      %s18 = ssub.s32 %s12, 2
      %s19 = sadd.s32 %s12, 1
      %s20 = ssub.s32 %s12, %s19
      %p21 = scmp.eq.s32.totalorder %s20, 0
      %s23 = sadd.s32 %s22, 1
      %s24 = scalar_select %p21, %s22, %s23
      %p27 = pneg %p21
      %p28 = scmp.eq.s32.totalorder %s12, 1
      %p29 = por %p27, %p28
      %p30 = scmp.ne.s32.totalorder %s22, %s25
      %p31 = scmp.eq.s32.totalorder %s12, 0
      %p32 = por %p30, %p31
      %p33 = scmp.ne.s32.totalorder %s22, %s25
      %p34 = scmp.eq.s32.totalorder %s17, 1
      %p35 = por %p33, %p34
      %p36 = scmp.ne.s32.totalorder %s25, %s26
      %p37 = scmp.eq.s32.totalorder %s17, 0
      %p38 = por %p36, %p37
      %p39 = scmp.ne.s32.totalorder %s25, %s26
      %p40 = scmp.eq.s32.totalorder %s18, 1
      %p41 = por %p39, %p40
      %p43 = scmp.ne.s32.totalorder %s26, %s42
      %p44 = scmp.eq.s32.totalorder %s18, 0
      %p45 = por %p43, %p44
      %s47 = sadd.s32 %s46, 1
      %p50 = scmp.eq.s32.totalorder %s12, 1
      %p51 = scmp.ne.s32.totalorder %s46, %s48
      %p52 = scmp.eq.s32.totalorder %s12, 0
      %p53 = por %p51, %p52
      %p54 = scmp.ne.s32.totalorder %s46, %s48
      %p55 = scmp.eq.s32.totalorder %s17, 1
      %p56 = por %p54, %p55
      %p57 = scmp.ne.s32.totalorder %s48, %s49
      %p58 = scmp.eq.s32.totalorder %s17, 0
      %p59 = por %p57, %p58
      %p60 = scmp.ne.s32.totalorder %s48, %s49
      %p61 = scmp.eq.s32.totalorder %s18, 1
      %p62 = por %p60, %p61
      %p64 = scmp.ne.s32.totalorder %s49, %s63
      %p65 = scmp.eq.s32.totalorder %s18, 0
      %p66 = por %p64, %p65
      %s68 = sadd.s32 %s67, 1
      %p71 = scmp.eq.s32.totalorder %s12, 1
      %p72 = scmp.ne.s32.totalorder %s67, %s69
      %p73 = scmp.eq.s32.totalorder %s12, 0
      %p74 = por %p72, %p73
      %p75 = scmp.ne.s32.totalorder %s67, %s69
      %p76 = scmp.eq.s32.totalorder %s17, 1
      %p77 = por %p75, %p76
      %p78 = scmp.ne.s32.totalorder %s69, %s70
      %p79 = scmp.eq.s32.totalorder %s17, 0
      %p80 = por %p78, %p79
      %p81 = scmp.ne.s32.totalorder %s69, %s70
      %p82 = scmp.eq.s32.totalorder %s18, 1
      %p83 = por %p81, %p82
      %p85 = scmp.ne.s32.totalorder %s70, %s84
      %p86 = scmp.eq.s32.totalorder %s18, 0
      %p87 = por %p85, %p86
      %s89 = sadd.s32 %s88, 1
      %p92 = scmp.eq.s32.totalorder %s12, 1
      %p93 = scmp.ne.s32.totalorder %s88, %s90
      %p94 = scmp.eq.s32.totalorder %s12, 0
      %p95 = por %p93, %p94
      %p96 = scmp.ne.s32.totalorder %s88, %s90
      %p97 = scmp.eq.s32.totalorder %s17, 1
      %p98 = por %p96, %p97
      %p99 = scmp.ne.s32.totalorder %s90, %s91
      %p100 = scmp.eq.s32.totalorder %s17, 0
      %p101 = por %p99, %p100
      %p102 = scmp.ne.s32.totalorder %s90, %s91
      %p103 = scmp.eq.s32.totalorder %s18, 1
      %p104 = por %p102, %p103
      %p106 = scmp.ne.s32.totalorder %s91, %s105
      %p107 = scmp.eq.s32.totalorder %s18, 0
      %p108 = por %p106, %p107
      %s110 = sadd.s32 %s109, 1
      %p113 = scmp.eq.s32.totalorder %s12, 1
      %p114 = scmp.ne.s32.totalorder %s109, %s111
      %p115 = scmp.eq.s32.totalorder %s12, 0
      %p116 = por %p114, %p115
      %p117 = scmp.ne.s32.totalorder %s109, %s111
      %p118 = scmp.eq.s32.totalorder %s17, 1
      %p119 = por %p117, %p118
      %p120 = scmp.ne.s32.totalorder %s111, %s112
      %p121 = scmp.eq.s32.totalorder %s17, 0
      %p122 = por %p120, %p121
      %p123 = scmp.ne.s32.totalorder %s111, %s112
      %p124 = scmp.eq.s32.totalorder %s18, 1
      %p125 = por %p123, %p124
      %p127 = scmp.ne.s32.totalorder %s112, %s126
      %p128 = scmp.eq.s32.totalorder %s18, 0
      %p129 = por %p127, %p128
      %s130 = ssub.s32 %s12, %s19
      %p131 = scmp.eq.s32.totalorder %s130, 0
      %s133 = sadd.s32 %s132, 1
      %s134 = scalar_select %p131, %s132, %s133
      %p137 = pneg %p131
      %p138 = scmp.eq.s32.totalorder %s12, 1
      %p139 = por %p137, %p138
      %p140 = scmp.ne.s32.totalorder %s132, %s135
      %p141 = scmp.eq.s32.totalorder %s12, 0
      %p142 = por %p140, %p141
      %p143 = scmp.ne.s32.totalorder %s132, %s135
      %p144 = scmp.eq.s32.totalorder %s17, 1
      %p145 = por %p143, %p144
      %p146 = scmp.ne.s32.totalorder %s135, %s136
      %p147 = scmp.eq.s32.totalorder %s17, 0
      %p148 = por %p146, %p147
      %p149 = scmp.ne.s32.totalorder %s135, %s136
      %p150 = scmp.eq.s32.totalorder %s18, 1
      %p151 = por %p149, %p150
      %p153 = scmp.ne.s32.totalorder %s136, %s152
      %p154 = scmp.eq.s32.totalorder %s18, 0
      %p155 = por %p153, %p154
      %p156 = scmp.le.s32.totalorder 1, %s12
      %p157 = scmp.lt.s32.totalorder %s12, 3
      %p158 = pnand %p156, %p157
      %p159 = pneg %p158
      // Predicated region
      $region9: #{_lambda_.1} parent=5 // pred_check
        _
      $region10: #{_lambda_.1} parent=5 // pred_check_branch
        %161 = sbr.rel (%p158) target = $region12
      $region11: #{_lambda_.1} parent=5 // pred_region
        %s162 = ssub.s32 %s12, 1
        // Predicated region
        $region13: #{_lambda_.1} parent=11 // pred_check
          %p163 = pneg %p59
        $region14: #{_lambda_.1} parent=11 // pred_check_branch
          %165 = sbr.rel (%p163) target = $region16
        $region15: #{_lambda_.1} parent=11 // pred_region
          %s167 = ssub.s32 128, 128
          %168 = vsyncadd [#allocation4], %s167
          %s170 = sshll.u32 [#allocation3], 4
          %s171 = int_to_ptr.vmem [resolvable:$true] %s170
          %173 = dma.hbm_to_vmem [thread:$0]  %s1, 128, %s171, [#allocation4]
        $region16: #{_lambda_.1} parent=11 // pred_fallthru
          _
        // Predicated region
        $region17: #{_lambda_.1} parent=11 // pred_check
          %p174 = pneg %p80
        $region18: #{_lambda_.1} parent=11 // pred_check_branch
          %176 = sbr.rel (%p174) target = $region20
        $region19: #{_lambda_.1} parent=11 // pred_region
          _
        $region20: #{_lambda_.1} parent=11 // pred_fallthru
          _
        // Predicated region
        $region21: #{_lambda_.1} parent=11 // pred_check
          %p177 = pneg %p101
        $region22: #{_lambda_.1} parent=11 // pred_check_branch
          %179 = sbr.rel (%p177) target = $region24
        $region23: #{_lambda_.1} parent=11 // pred_region
          _
        $region24: #{_lambda_.1} parent=11 // pred_fallthru
          _
        // Predicated region
        $region25: #{_lambda_.1} parent=11 // pred_check
          %p180 = pneg %p122
        $region26: #{_lambda_.1} parent=11 // pred_check_branch
          %182 = sbr.rel (%p180) target = $region28
        $region27: #{_lambda_.1} parent=11 // pred_region
          _
        $region28: #{_lambda_.1} parent=11 // pred_fallthru
          _
      $region12: #{_lambda_.1} parent=5 // pred_fallthru
        _
      %p183 = scmp.lt.s32.totalorder %s12, 2
      // Predicated region
      $region29: #{_lambda_.1} parent=5 // pred_check
        %p184 = pneg %p183
      $region30: #{_lambda_.1} parent=5 // pred_check_branch
        %186 = sbr.rel (%p184) target = $region32
      $region31: #{_lambda_.1} parent=5 // pred_region
        // Predicated region
        $region33: #{_lambda_.1} parent=31 // pred_check
          %p187 = pneg %p32
        $region34: #{_lambda_.1} parent=31 // pred_check_branch
          %189 = sbr.rel (%p187) target = $region36
        $region35: #{_lambda_.1} parent=31 // pred_region
          %s190 = smul.u32 4, %s12
          %p191 = scmp.lt.s32.totalorder %s190, 7
          %s192 = scalar_select %p191, %s190, 7
          %s193 = smul.addr %s192, 8
          %s194 = scalar_lea.vmem %s0, %s193
          %s195 = smul.u32 4, %s12
        $region36: #{_lambda_.1} parent=31 // pred_fallthru
          _
      $region32: #{_lambda_.1} parent=5 // pred_fallthru
        _
      %p196 = scmp.le.s32.totalorder 1, %s12
      %p197 = scmp.lt.s32.totalorder %s12, 3
      %p198 = pnand %p196, %p197
      %p199 = pneg %p198
      // Predicated region
      $region37: #{_lambda_.1} parent=5 // pred_check
        _
      $region38: #{_lambda_.1} parent=5 // pred_check_branch
        %201 = sbr.rel (%p198) target = $region40
      $region39: #{_lambda_.1} parent=5 // pred_region
        %s202 = ssub.s32 %s12, 1
        // Predicated region
        $region41: #{_lambda_.1} parent=39 // pred_check
          %p203 = pneg %p59
        $region42: #{_lambda_.1} parent=39 // pred_check_branch
          %205 = sbr.rel (%p203) target = $region44
        $region43: #{_lambda_.1} parent=39 // pred_region
          %206 = dma.done [#allocation4], 128
        $region44: #{_lambda_.1} parent=39 // pred_fallthru
          _
        %s207 = smul.u32 4, %s17
        %p208 = scmp.lt.s32.totalorder %s207, 7
        %s209 = scalar_select %p208, %s207, 7
        %s210 = smul.addr %s209, 8
        %s211 = scalar_lea.vmem %s0, %s210
        %p212 = pneg %p38
        %p213 = pneg %p35
        %p214 = pneg %p59
        %p215 = pneg %p56
        %p216 = pneg %p80
        %p217 = pneg %p77
        %p218 = pneg %p101
        %p219 = pneg %p98
        %p220 = pneg %p122
        %p221 = pneg %p119
        %p222 = pneg %p148
        %p223 = pneg %p145
        %s224 = smul.u32 4, %s17
        %p225 = scmp.lt.s32.totalorder %s224, 7
        %s226 = scalar_select %p225, %s224, 7
        %s227 = smul.addr %s226, 8
        %s228 = scalar_lea.vmem %s5, %s227
        %s229 = smul.u32 4, %s17
        %p230 = scmp.lt.s32.totalorder %s229, 7
        %s231 = scalar_select %p230, %s229, 7
        %s232 = smul.addr %s231, 8
        %s233 = scalar_lea.vmem %s0, %s232
        %s234 = smul.u32 4, %s17
        %s235 = smul.u32 4, %s17
        %p236 = scmp.lt.s32.totalorder %s235, 7
        %s237 = scalar_select %p236, %s235, 7
        %s238 = smul.addr %s237, 8
        %s239 = scalar_lea.vmem %s5, %s238
        %s240 = smul.u32 4, %s17
        %p241 = scmp.eq.s32.totalorder %s17, 0
        // Predicated region
        $region45: #{_lambda_.1} parent=39 // pred_check
          %p242 = pneg %p241
        $region46: #{_lambda_.1} parent=39 // pred_check_branch
          %244 = sbr.rel (%p242) target = $region48
        $region47: #{_lambda_.1} parent=39 // pred_region
          %v245 = vld [vmem:[%s4] sm:$0xff]
          %246 = vst [vmem:[#allocation2] sm:$0xff] %v245
        $region48: #{_lambda_.1} parent=39 // pred_fallthru
          _
        %v247 = vld [vmem:[%s233] sm:$0xff]
        %v248 = vld [vmem:[%s233 + $0x8] sm:$0xff]
        %v249 = vld [vmem:[%s233 + $0x10] sm:$0xff]
        %v250 = vld [vmem:[%s233 + $0x18] sm:$0xff]
        %v251 = vld [vmem:[#allocation3] sm:$0x1f]
        %v252 = vld [vmem:[%s3] sm:$0x1]
        %v254 = vlaneseq
        %v255 = vshrl.u32 %v254, 7
        %v256 = vsub.s32 0, %v255
        %v257 = vrot.slane %v252, %v256
        %vm259 = vcmask 39936
        %v261 = vsel %vm259, %v247, 0
        %v264 = vsel %vm259, %v248, 0
        %v267 = vsel %vm259, %v249, 0
        %v270 = vsel %vm259, %v250, 0
        %vm272 = vcmask 1044480
        %v274 = vsel %vm272, %v251, 0
        %276 = vmatprep.subr.mxu0 0.0
        %277 = vmatpush1.msra.mxu0 %v274
        %278 = vmatprep.subr.mxu0 0.0
        %279 = vmatpush1.msra.mxu0 0.0
        %280 = vmatprep.subr.mxu0 0.0
        %281 = vmatpush1.msra.mxu0 0.0
        %282 = vmatprep.subr.mxu0 0.0
        %283 = vmatpush1.msra.mxu0 0.0
        %284 = vmatprep.subr.mxu0 0.0
        %285 = vmatpush1.msra.mxu0 0.0
        %286 = vmatprep.subr.mxu0 0.0
        %287 = vmatpush1.msra.mxu0 0.0
        %288 = vmatprep.subr.mxu0 0.0
        %289 = vmatpush1.msra.mxu0 0.0
        %290 = vmatprep.subr.mxu0 0.0
        %291 = vmatpush1.msra.mxu0 0.0
        %292 = vmatprep.subr.mxu0 0.0
        %293 = vmatpush1.msra.mxu0 0.0
        %294 = vmatprep.subr.mxu0 0.0
        %295 = vmatpush1.msra.mxu0 0.0
        %296 = vmatprep.subr.mxu0 0.0
        %297 = vmatpush1.msra.mxu0 0.0
        %298 = vmatprep.subr.mxu0 0.0
        %299 = vmatpush1.msra.mxu0 0.0
        %300 = vmatprep.subr.mxu0 0.0
        %301 = vmatpush1.msra.mxu0 0.0
        %302 = vmatprep.subr.mxu0 0.0
        %303 = vmatpush1.msra.mxu0 0.0
        %304 = vmatprep.subr.mxu0 0.0
        %305 = vmatpush1.msra.mxu0 0.0
        %306 = vmatprep.subr.mxu0 0.0
        %307 = vmatpush1.msra.mxu0 0.0
        %308 = vmatprep.subr.mxu0 0.0
        %309 = vmatpush1.msra.mxu0 0.0
        %310 = vmatprep.subr.mxu0 0.0
        %311 = vmatpush1.msra.mxu0 0.0
        %312 = vmatprep.subr.mxu0 0.0
        %313 = vmatpush1.msra.mxu0 0.0
        %314 = vmatprep.subr.mxu0 0.0
        %315 = vmatpush1.msra.mxu0 0.0
        %316 = vmatprep.subr.mxu0 0.0
        %317 = vmatpush1.msra.mxu0 0.0
        %318 = vmatprep.subr.mxu0 0.0
        %319 = vmatpush1.msra.mxu0 0.0
        %320 = vmatprep.subr.mxu0 0.0
        %321 = vmatpush1.msra.mxu0 0.0
        %322 = vmatprep.subr.mxu0 0.0
        %323 = vmatpush1.msra.mxu0 0.0
        %324 = vmatprep.subr.mxu0 0.0
        %325 = vmatpush1.msra.mxu0 0.0
        %326 = vmatprep.subr.mxu0 0.0
        %327 = vmatpush1.msra.mxu0 0.0
        %328 = vmatprep.subr.mxu0 0.0
        %329 = vmatpush1.msra.mxu0 0.0
        %330 = vmatprep.subr.mxu0 0.0
        %331 = vmatpush1.msra.mxu0 0.0
        %332 = vmatprep.subr.mxu0 0.0
        %333 = vmatpush1.msra.mxu0 0.0
        %334 = vmatprep.subr.mxu0 0.0
        %335 = vmatpush1.msra.mxu0 0.0
        %336 = vmatprep.subr.mxu0 0.0
        %337 = vmatpush1.msra.mxu0 0.0
        %338 = vmatprep.subr.mxu0 0.0
        %339 = vmatpush1.msra.mxu0 0.0
        %340 = vmatprep.mubr.f32.mxu0 0.0
        %341 = vmatmul.mubr.f32.gmra.mrb[0].mxu0 %v261
        %v342 = vpop.f32.mrb[0].mxu0
        %v343 = vadd.f32 %v257, %v342
        %v344 = vpop.f32.mrb[0].mxu0
        %345 = vmatprep.mubr.f32.mxu0 0.0
        %346 = vmatmul.mubr.f32.gmra.mrb[0].mxu0 %v264
        %v347 = vpop.f32.mrb[0].mxu0
        %v348 = vadd.f32 %v257, %v347
        %v349 = vpop.f32.mrb[0].mxu0
        %350 = vmatprep.mubr.f32.mxu0 0.0
        %351 = vmatmul.mubr.f32.gmra.mrb[0].mxu0 %v267
        %v352 = vpop.f32.mrb[0].mxu0
        %v353 = vadd.f32 %v257, %v352
        %v354 = vpop.f32.mrb[0].mxu0
        %355 = vmatprep.mubr.f32.mxu0 0.0
        %356 = vmatmul.mubr.f32.gmra.mrb[0].mxu0 %v270
        %v357 = vpop.f32.mrb[0].mxu0
        %v358 = vadd.f32 %v257, %v357
        %v359 = vpop.f32.mrb[0].mxu0
        %360 = vdwg.mxu0
        %361 = vst [vmem:[%s239] sm:$0xff] %v343
        %362 = vst [vmem:[%s239 + $0x8] sm:$0xff] %v348
        %363 = vst [vmem:[%s239 + $0x10] sm:$0xff] %v353
        %364 = vst [vmem:[%s239 + $0x18] sm:$0xff] %v358
        %v365 = vld [vmem:[%s2] sm:$0xff]
        %v366 = vld [vmem:[%s2 + $0x8] sm:$0xff]
        %v367 = vld [vmem:[%s2 + $0x10] sm:$0xff]
        %v368 = vld [vmem:[%s2 + $0x18] sm:$0xff]
        %v369 = vld [vmem:[%s2 + $0x20] sm:$0xff]
        %v370 = vld [vmem:[%s2 + $0x28] sm:$0xff]
        %v371 = vld [vmem:[%s2 + $0x30] sm:$0xff]
        %v372 = vld [vmem:[%s2 + $0x38] sm:$0xff]
        %v373 = vld [vmem:[%s2 + $0x40] sm:$0xff]
        %v374 = vld [vmem:[%s2 + $0x48] sm:$0xff]
        %v375 = vld [vmem:[%s2 + $0x50] sm:$0xff]
        %v376 = vld [vmem:[%s2 + $0x58] sm:$0xff]
        %v377 = vld [vmem:[%s2 + $0x60] sm:$0xff]
        %v378 = vld [vmem:[%s2 + $0x68] sm:$0xff]
        %v379 = vld [vmem:[%s2 + $0x70] sm:$0xff]
        %v380 = vld [vmem:[%s2 + $0x78] sm:$0xff]
        %v381 = vld [vmem:[#allocation2] sm:$0xff]
        %v382 = vld [vmem:[%s239] sm:$0xff]
        %383 = vmatprep.subr.mxu0 0.0
        %384 = vmatpush1.msra.mxu0 %v365
        %385 = vmatprep.subr.mxu0 0.0
        %386 = vmatpush1.msra.mxu0 %v366
        %387 = vmatprep.subr.mxu0 0.0
        %388 = vmatpush1.msra.mxu0 %v367
        %389 = vmatprep.subr.mxu0 0.0
        %390 = vmatpush1.msra.mxu0 %v368
        %391 = vmatprep.subr.mxu0 0.0
        %392 = vmatpush1.msra.mxu0 %v369
        %393 = vmatprep.subr.mxu0 0.0
        %394 = vmatpush1.msra.mxu0 %v370
        %395 = vmatprep.subr.mxu0 0.0
        %396 = vmatpush1.msra.mxu0 %v371
        %397 = vmatprep.subr.mxu0 0.0
        %398 = vmatpush1.msra.mxu0 %v372
        %399 = vmatprep.subr.mxu0 0.0
        %400 = vmatpush1.msra.mxu0 %v373
        %401 = vmatprep.subr.mxu0 0.0
        %402 = vmatpush1.msra.mxu0 %v374
        %403 = vmatprep.subr.mxu0 0.0
        %404 = vmatpush1.msra.mxu0 %v375
        %405 = vmatprep.subr.mxu0 0.0
        %406 = vmatpush1.msra.mxu0 %v376
        %407 = vmatprep.subr.mxu0 0.0
        %408 = vmatpush1.msra.mxu0 %v377
        %409 = vmatprep.subr.mxu0 0.0
        %410 = vmatpush1.msra.mxu0 %v378
        %411 = vmatprep.subr.mxu0 0.0
        %412 = vmatpush1.msra.mxu0 %v379
        %413 = vmatprep.subr.mxu0 0.0
        %414 = vmatpush1.msra.mxu0 %v380
        %415 = vmatprep.subr.mxu0 0.0
        %416 = vmatpush1.msra.mxu0 0.0
        %417 = vmatprep.subr.mxu0 0.0
        %418 = vmatpush1.msra.mxu0 0.0
        %419 = vmatprep.subr.mxu0 0.0
        %420 = vmatpush1.msra.mxu0 0.0
        %421 = vmatprep.subr.mxu0 0.0
        %422 = vmatpush1.msra.mxu0 0.0
        %423 = vmatprep.subr.mxu0 0.0
        %424 = vmatpush1.msra.mxu0 0.0
        %425 = vmatprep.subr.mxu0 0.0
        %426 = vmatpush1.msra.mxu0 0.0
        %427 = vmatprep.subr.mxu0 0.0
        %428 = vmatpush1.msra.mxu0 0.0
        %429 = vmatprep.subr.mxu0 0.0
        %430 = vmatpush1.msra.mxu0 0.0
        %431 = vmatprep.subr.mxu0 0.0
        %432 = vmatpush1.msra.mxu0 0.0
        %433 = vmatprep.subr.mxu0 0.0
        %434 = vmatpush1.msra.mxu0 0.0
        %435 = vmatprep.subr.mxu0 0.0
        %436 = vmatpush1.msra.mxu0 0.0
        %437 = vmatprep.subr.mxu0 0.0
        %438 = vmatpush1.msra.mxu0 0.0
        %439 = vmatprep.subr.mxu0 0.0
        %440 = vmatpush1.msra.mxu0 0.0
        %441 = vmatprep.subr.mxu0 0.0
        %442 = vmatpush1.msra.mxu0 0.0
        %443 = vmatprep.subr.mxu0 0.0
        %444 = vmatpush1.msra.mxu0 0.0
        %445 = vmatprep.subr.mxu0 0.0
        %446 = vmatpush1.msra.mxu0 0.0
        %447 = vmatprep.mubr.f32.mxu0 0.0
        %448 = vmatmul.mubr.f32.gmra.mrb[0].mxu0 %v381
        %v449 = vpop.f32.mrb[0].mxu0
        %v450 = vadd.f32 0.0, %v449
        %v451 = vpop.f32.mrb[0].mxu0
        %452 = vdwg.mxu0
        %v453 = vadd.f32 %v382, %v450
        %v454 = vtanh.pop %v453
        %455 = vst [vmem:[%s239] sm:$0xff] %v454
        %s456 = scalar_lea.vmem %s239, 8
        %v457 = vld [vmem:[%s456] sm:$0xff]
        %458 = vmatprep.subr.mxu0 0.0
        %459 = vmatpush1.msra.mxu0 %v365
        %460 = vmatprep.subr.mxu0 0.0
        %461 = vmatpush1.msra.mxu0 %v366
        %462 = vmatprep.subr.mxu0 0.0
        %463 = vmatpush1.msra.mxu0 %v367
        %464 = vmatprep.subr.mxu0 0.0
        %465 = vmatpush1.msra.mxu0 %v368
        %466 = vmatprep.subr.mxu0 0.0
        %467 = vmatpush1.msra.mxu0 %v369
        %468 = vmatprep.subr.mxu0 0.0
        %469 = vmatpush1.msra.mxu0 %v370
        %470 = vmatprep.subr.mxu0 0.0
        %471 = vmatpush1.msra.mxu0 %v371
        %472 = vmatprep.subr.mxu0 0.0
        %473 = vmatpush1.msra.mxu0 %v372
        %474 = vmatprep.subr.mxu0 0.0
        %475 = vmatpush1.msra.mxu0 %v373
        %476 = vmatprep.subr.mxu0 0.0
        %477 = vmatpush1.msra.mxu0 %v374
        %478 = vmatprep.subr.mxu0 0.0
        %479 = vmatpush1.msra.mxu0 %v375
        %480 = vmatprep.subr.mxu0 0.0
        %481 = vmatpush1.msra.mxu0 %v376
        %482 = vmatprep.subr.mxu0 0.0
        %483 = vmatpush1.msra.mxu0 %v377
        %484 = vmatprep.subr.mxu0 0.0
        %485 = vmatpush1.msra.mxu0 %v378
        %486 = vmatprep.subr.mxu0 0.0
        %487 = vmatpush1.msra.mxu0 %v379
        %488 = vmatprep.subr.mxu0 0.0
        %489 = vmatpush1.msra.mxu0 %v380
        %490 = vmatprep.subr.mxu0 0.0
        %491 = vmatpush1.msra.mxu0 0.0
        %492 = vmatprep.subr.mxu0 0.0
        %493 = vmatpush1.msra.mxu0 0.0
        %494 = vmatprep.subr.mxu0 0.0
        %495 = vmatpush1.msra.mxu0 0.0
        %496 = vmatprep.subr.mxu0 0.0
        %497 = vmatpush1.msra.mxu0 0.0
        %498 = vmatprep.subr.mxu0 0.0
        %499 = vmatpush1.msra.mxu0 0.0
        %500 = vmatprep.subr.mxu0 0.0
        %501 = vmatpush1.msra.mxu0 0.0
        %502 = vmatprep.subr.mxu0 0.0
        %503 = vmatpush1.msra.mxu0 0.0
        %504 = vmatprep.subr.mxu0 0.0
        %505 = vmatpush1.msra.mxu0 0.0
        %506 = vmatprep.subr.mxu0 0.0
        %507 = vmatpush1.msra.mxu0 0.0
        %508 = vmatprep.subr.mxu0 0.0
        %509 = vmatpush1.msra.mxu0 0.0
        %510 = vmatprep.subr.mxu0 0.0
        %511 = vmatpush1.msra.mxu0 0.0
        %512 = vmatprep.subr.mxu0 0.0
        %513 = vmatpush1.msra.mxu0 0.0
        %514 = vmatprep.subr.mxu0 0.0
        %515 = vmatpush1.msra.mxu0 0.0
        %516 = vmatprep.subr.mxu0 0.0
        %517 = vmatpush1.msra.mxu0 0.0
        %518 = vmatprep.subr.mxu0 0.0
        %519 = vmatpush1.msra.mxu0 0.0
        %520 = vmatprep.subr.mxu0 0.0
        %521 = vmatpush1.msra.mxu0 0.0
        %522 = vmatprep.mubr.f32.mxu0 0.0
        %523 = vmatmul.mubr.f32.gmra.mrb[0].mxu0 %v454
        %v524 = vpop.f32.mrb[0].mxu0
        %v525 = vadd.f32 0.0, %v524
        %v526 = vpop.f32.mrb[0].mxu0
        %527 = vdwg.mxu0
        %v528 = vadd.f32 %v457, %v525
        %v529 = vtanh.pop %v528
        %530 = vst [vmem:[%s456] sm:$0xff] %v529
        %s531 = scalar_lea.vmem %s239, 16
        %v532 = vld [vmem:[%s531] sm:$0xff]
        %533 = vmatprep.subr.mxu0 0.0
        %534 = vmatpush1.msra.mxu0 %v365
        %535 = vmatprep.subr.mxu0 0.0
        %536 = vmatpush1.msra.mxu0 %v366
        %537 = vmatprep.subr.mxu0 0.0
        %538 = vmatpush1.msra.mxu0 %v367
        %539 = vmatprep.subr.mxu0 0.0
        %540 = vmatpush1.msra.mxu0 %v368
        %541 = vmatprep.subr.mxu0 0.0
        %542 = vmatpush1.msra.mxu0 %v369
        %543 = vmatprep.subr.mxu0 0.0
        %544 = vmatpush1.msra.mxu0 %v370
        %545 = vmatprep.subr.mxu0 0.0
        %546 = vmatpush1.msra.mxu0 %v371
        %547 = vmatprep.subr.mxu0 0.0
        %548 = vmatpush1.msra.mxu0 %v372
        %549 = vmatprep.subr.mxu0 0.0
        %550 = vmatpush1.msra.mxu0 %v373
        %551 = vmatprep.subr.mxu0 0.0
        %552 = vmatpush1.msra.mxu0 %v374
        %553 = vmatprep.subr.mxu0 0.0
        %554 = vmatpush1.msra.mxu0 %v375
        %555 = vmatprep.subr.mxu0 0.0
        %556 = vmatpush1.msra.mxu0 %v376
        %557 = vmatprep.subr.mxu0 0.0
        %558 = vmatpush1.msra.mxu0 %v377
        %559 = vmatprep.subr.mxu0 0.0
        %560 = vmatpush1.msra.mxu0 %v378
        %561 = vmatprep.subr.mxu0 0.0
        %562 = vmatpush1.msra.mxu0 %v379
        %563 = vmatprep.subr.mxu0 0.0
        %564 = vmatpush1.msra.mxu0 %v380
        %565 = vmatprep.subr.mxu0 0.0
        %566 = vmatpush1.msra.mxu0 0.0
        %567 = vmatprep.subr.mxu0 0.0
        %568 = vmatpush1.msra.mxu0 0.0
        %569 = vmatprep.subr.mxu0 0.0
        %570 = vmatpush1.msra.mxu0 0.0
        %571 = vmatprep.subr.mxu0 0.0
        %572 = vmatpush1.msra.mxu0 0.0
        %573 = vmatprep.subr.mxu0 0.0
        %574 = vmatpush1.msra.mxu0 0.0
        %575 = vmatprep.subr.mxu0 0.0
        %576 = vmatpush1.msra.mxu0 0.0
        %577 = vmatprep.subr.mxu0 0.0
        %578 = vmatpush1.msra.mxu0 0.0
        %579 = vmatprep.subr.mxu0 0.0
        %580 = vmatpush1.msra.mxu0 0.0
        %581 = vmatprep.subr.mxu0 0.0
        %582 = vmatpush1.msra.mxu0 0.0
        %583 = vmatprep.subr.mxu0 0.0
        %584 = vmatpush1.msra.mxu0 0.0
        %585 = vmatprep.subr.mxu0 0.0
        %586 = vmatpush1.msra.mxu0 0.0
        %587 = vmatprep.subr.mxu0 0.0
        %588 = vmatpush1.msra.mxu0 0.0
        %589 = vmatprep.subr.mxu0 0.0
        %590 = vmatpush1.msra.mxu0 0.0
        %591 = vmatprep.subr.mxu0 0.0
        %592 = vmatpush1.msra.mxu0 0.0
        %593 = vmatprep.subr.mxu0 0.0
        %594 = vmatpush1.msra.mxu0 0.0
        %595 = vmatprep.subr.mxu0 0.0
        %596 = vmatpush1.msra.mxu0 0.0
        %597 = vmatprep.mubr.f32.mxu0 0.0
        %598 = vmatmul.mubr.f32.gmra.mrb[0].mxu0 %v529
        %v599 = vpop.f32.mrb[0].mxu0
        %v600 = vadd.f32 0.0, %v599
        %v601 = vpop.f32.mrb[0].mxu0
        %602 = vdwg.mxu0
        %v603 = vadd.f32 %v532, %v600
        %v604 = vtanh.pop %v603
        %605 = vst [vmem:[%s531] sm:$0xff] %v604
        %s606 = scalar_lea.vmem %s239, 24
        %v607 = vld [vmem:[%s606] sm:$0xff]
        %608 = vmatprep.subr.mxu0 0.0
        %609 = vmatpush1.msra.mxu0 %v365
        %610 = vmatprep.subr.mxu0 0.0
        %611 = vmatpush1.msra.mxu0 %v366
        %612 = vmatprep.subr.mxu0 0.0
        %613 = vmatpush1.msra.mxu0 %v367
        %614 = vmatprep.subr.mxu0 0.0
        %615 = vmatpush1.msra.mxu0 %v368
        %616 = vmatprep.subr.mxu0 0.0
        %617 = vmatpush1.msra.mxu0 %v369
        %618 = vmatprep.subr.mxu0 0.0
        %619 = vmatpush1.msra.mxu0 %v370
        %620 = vmatprep.subr.mxu0 0.0
        %621 = vmatpush1.msra.mxu0 %v371
        %622 = vmatprep.subr.mxu0 0.0
        %623 = vmatpush1.msra.mxu0 %v372
        %624 = vmatprep.subr.mxu0 0.0
        %625 = vmatpush1.msra.mxu0 %v373
        %626 = vmatprep.subr.mxu0 0.0
        %627 = vmatpush1.msra.mxu0 %v374
        %628 = vmatprep.subr.mxu0 0.0
        %629 = vmatpush1.msra.mxu0 %v375
        %630 = vmatprep.subr.mxu0 0.0
        %631 = vmatpush1.msra.mxu0 %v376
        %632 = vmatprep.subr.mxu0 0.0
        %633 = vmatpush1.msra.mxu0 %v377
        %634 = vmatprep.subr.mxu0 0.0
        %635 = vmatpush1.msra.mxu0 %v378
        %636 = vmatprep.subr.mxu0 0.0
        %637 = vmatpush1.msra.mxu0 %v379
        %638 = vmatprep.subr.mxu0 0.0
        %639 = vmatpush1.msra.mxu0 %v380
        %640 = vmatprep.subr.mxu0 0.0
        %641 = vmatpush1.msra.mxu0 0.0
        %642 = vmatprep.subr.mxu0 0.0
        %643 = vmatpush1.msra.mxu0 0.0
        %644 = vmatprep.subr.mxu0 0.0
        %645 = vmatpush1.msra.mxu0 0.0
        %646 = vmatprep.subr.mxu0 0.0
        %647 = vmatpush1.msra.mxu0 0.0
        %648 = vmatprep.subr.mxu0 0.0
        %649 = vmatpush1.msra.mxu0 0.0
        %650 = vmatprep.subr.mxu0 0.0
        %651 = vmatpush1.msra.mxu0 0.0
        %652 = vmatprep.subr.mxu0 0.0
        %653 = vmatpush1.msra.mxu0 0.0
        %654 = vmatprep.subr.mxu0 0.0
        %655 = vmatpush1.msra.mxu0 0.0
        %656 = vmatprep.subr.mxu0 0.0
        %657 = vmatpush1.msra.mxu0 0.0
        %658 = vmatprep.subr.mxu0 0.0
        %659 = vmatpush1.msra.mxu0 0.0
        %660 = vmatprep.subr.mxu0 0.0
        %661 = vmatpush1.msra.mxu0 0.0
        %662 = vmatprep.subr.mxu0 0.0
        %663 = vmatpush1.msra.mxu0 0.0
        %664 = vmatprep.subr.mxu0 0.0
        %665 = vmatpush1.msra.mxu0 0.0
        %666 = vmatprep.subr.mxu0 0.0
        %667 = vmatpush1.msra.mxu0 0.0
        %668 = vmatprep.subr.mxu0 0.0
        %669 = vmatpush1.msra.mxu0 0.0
        %670 = vmatprep.subr.mxu0 0.0
        %671 = vmatpush1.msra.mxu0 0.0
        %672 = vmatprep.mubr.f32.mxu0 0.0
        %673 = vmatmul.mubr.f32.gmra.mrb[0].mxu0 %v604
        %v674 = vpop.f32.mrb[0].mxu0
        %v675 = vadd.f32 0.0, %v674
        %v676 = vpop.f32.mrb[0].mxu0
        %677 = vdwg.mxu0
        %v678 = vadd.f32 %v607, %v675
        %v679 = vtanh.pop %v678
        %680 = vst [vmem:[%s606] sm:$0xff] %v679
        %681 = vst [vmem:[#allocation2] sm:$0xff] %v679
        %s682 = smul.u32 4, %s17
        %p683 = scmp.lt.s32.totalorder %s682, 7
        %s684 = scalar_select %p683, %s682, 7
        %s685 = smul.addr %s684, 8
        %s686 = scalar_lea.vmem %s5, %s685
        // Predicated region
        $region49: #{_lambda_.1} parent=39 // pred_check
          %p687 = pneg %p145
        $region50: #{_lambda_.1} parent=39 // pred_check_branch
          %689 = sbr.rel (%p687) target = $region52
        $region51: #{_lambda_.1} parent=39 // pred_region
          %s690 = smul.u32 4, %s17
        $region52: #{_lambda_.1} parent=39 // pred_fallthru
          _
      $region40: #{_lambda_.1} parent=5 // pred_fallthru
        _
      %p691 = scmp.le.s32.totalorder 2, %s12
      // Predicated region
      $region53: #{_lambda_.1} parent=5 // pred_check
        %p692 = pneg %p691
      $region54: #{_lambda_.1} parent=5 // pred_check_branch
        %694 = sbr.rel (%p692) target = $region56
      $region55: #{_lambda_.1} parent=5 // pred_region
        %s695 = ssub.s32 %s12, 2
        // Predicated region
        $region57: #{_lambda_.1} parent=55 // pred_check
          %p696 = pneg %p151
        $region58: #{_lambda_.1} parent=55 // pred_check_branch
          %698 = sbr.rel (%p696) target = $region60
        $region59: #{_lambda_.1} parent=55 // pred_region
          %s699 = smul.u32 4, %s18
          %p700 = scmp.lt.s32.totalorder %s699, 7
          %s701 = scalar_select %p700, %s699, 7
          %s702 = smul.addr %s701, 8
          %s703 = scalar_lea.vmem %s5, %s702
        $region60: #{_lambda_.1} parent=55 // pred_fallthru
          _
      $region56: #{_lambda_.1} parent=5 // pred_fallthru
        _
    $region6: #{_lambda_.1} parent=1 // loop_footer
      %s16 = sadd.s32 1, %s12
    $region7: #{_lambda_.1} parent=1 // loop_footer_branch
      %11 = sbr.rel target = $region3
    $region8: #{_lambda_.1} parent=1 // loop_exit
      _
    %704 = vsyncpa [#allocation4], 1
    %s705 = scalar_lea.sflag [#allocation4], 1
    %706 = vsyncpa %s705, 1

</llo_original>
